<compile_context>
chip_gen: v6e
topology: v6e:2x2x1
jax: 0.10.0
libtpu: 0.0.40
codegen_flags: <defaults>
</compile_context>

<pallas_src>
import functools

import jax
import jax.numpy as jnp
from jax.experimental import pallas as pl
from jax.experimental.pallas import tpu as pltpu


def _weight_calc_kernel(t_num, t_den, s_ref, w_ref, o_ref):
    # s_ref: VMEM (TB, D_packed) lane-packed block of S (PACK rows / vreg row),
    #        streamed over the (packed) batch dim.
    # w_ref: VMEM (D_packed, PACK) block-structured scaled weights (resident).
    # o_ref: VMEM (TB, PACK) f32 output block.
    s = s_ref[...].astype(jnp.float32)
    num = jnp.log1p(jnp.maximum(s, t_num))   # VPU max + EUP log (binding unit)
    den = jnp.log1p(jnp.maximum(s, t_den))
    x = num / den                            # exact divide; VALU slots are idle anyway
    # Weighted segmented reduce on the otherwise-idle MXU:
    #   out[r, j] = sum_k x[r, j*D + k] * (W/sum|W|)[k]  == y[PACK*r + j]
    o_ref[...] = jnp.dot(
        x, w_ref[...], preferred_element_type=jnp.float32).astype(o_ref.dtype)


def _tpu_vmem_bytes():
    try:
        return int(pltpu.get_tpu_info().vmem_capacity_bytes)
    except Exception:
        return 64 << 20                      # conservative (v7x-sized) fallback


def _choose_block_rows(b_pack, row_bytes, target_bytes):
    """Packed-row tile: ~target_bytes of *real* S per step, multiple of 8."""
    tb = (target_bytes // max(row_bytes, 1)) // 8 * 8
    tb = int(max(8, tb))
    if tb >= b_pack:
        return int(b_pack)                   # single block == full dim (any size ok)
    return tb


def weight_calculator_forward(S, W, thresh_nominator, thresh_denominator,
                              *, block_rows=None, stream_dtype=None):
    """Pallas implementation of WeightCalculatorAI.forward.

    S: (B, D) float32/bfloat16
    W: (D,)   parameter vector
    thresh_nominator / thresh_denominator: python floats (hyperparameters)
    stream_dtype: optional dtype (e.g. jnp.bfloat16) to stream S in; compute
                  stays f32.
    returns: (B,) float32
    """
    B, D = S.shape
    t_num = float(thresh_nominator)
    t_den = float(thresh_denominator)

    # Hoist the loop-invariant weight norm: (x @ W) / sum|W| == x @ (W/sum|W|).
    w32 = W.astype(jnp.float32)
    w_scaled = w32 / jnp.sum(jnp.abs(w32))

    # Lane-pack PACK consecutive batch rows into one 128-lane vreg row.
    pack = 128 // D if (D < 128 and 128 % D == 0) else 1
    d_packed = pack * D

    b_pad = pl.cdiv(B, pack) * pack
    if b_pad != B:
        # Pad with 1.0: max(1, T) >= 1 keeps the denominator log1p > 0, so
        # padded rows stay finite and cannot contaminate real rows through
        # the matmul (their W_mat columns are discarded anyway).
        S = jnp.concatenate([S, jnp.ones((b_pad - B, D), dtype=S.dtype)], axis=0)
    b_pack = b_pad // pack
    s_packed = S.reshape(b_pack, d_packed)   # free: row-major contiguous
    if stream_dtype is not None:
        s_packed = s_packed.astype(stream_dtype)

    # (d_packed, pack) block matrix: column j holds w_scaled in rows
    # j*D..(j+1)*D-1 and zeros elsewhere -> matmul does the segmented reduce.
    w_mat = jnp.kron(jnp.eye(pack, dtype=jnp.float32), w_scaled.reshape(D, 1))

    # Generation-aware block sizing / VMEM limit.
    vmem = _tpu_vmem_bytes()
    vmem_limit = min(64 << 20, max(32 << 20, vmem // 2))   # 32 MiB v7x, 64 MiB v5e/v6e
    target_block_bytes = vmem_limit // 4                   # x2 double-buffer <= limit/2
    row_bytes = d_packed * s_packed.dtype.itemsize
    if block_rows is None:
        block_rows = _choose_block_rows(b_pack, row_bytes, target_block_bytes)
    elif block_rows < b_pack:
        block_rows = max(8, (block_rows // 8) * 8)          # (8,128) tiling constraint
    grid = (pl.cdiv(b_pack, block_rows),)

    flops = 3 * B * D + 2 * b_pack * d_packed * pack       # max/max/div + matmul
    transcendentals = 2 * B * D                              # 2x log1p
    bytes_accessed = (s_packed.size * s_packed.dtype.itemsize
                      + w_mat.size * 4 + b_pack * pack * 4)

    out = pl.pallas_call(
        functools.partial(_weight_calc_kernel, t_num, t_den),
        out_shape=jax.ShapeDtypeStruct((b_pack, pack), jnp.float32),
        grid=grid,
        in_specs=[
            pl.BlockSpec((block_rows, d_packed), lambda i: (i, 0)),  # S, streamed
            pl.BlockSpec((d_packed, pack), lambda i: (0, 0)),        # W_mat, resident
        ],
        out_specs=pl.BlockSpec((block_rows, pack), lambda i: (i, 0)),
        compiler_params=pltpu.CompilerParams(
            dimension_semantics=("parallel",),
            vmem_limit_bytes=vmem_limit,
        ),
        cost_estimate=pl.CostEstimate(
            flops=flops,
            transcendentals=transcendentals,
            bytes_accessed=bytes_accessed,
        ),
    )(s_packed, w_mat)
    return out.reshape(-1)[:B]


def _reference(S, W, t_num, t_den):
    S = S.astype(jnp.float32)
    W = W.astype(jnp.float32)
    x = jnp.log(1.0 + jnp.maximum(S, t_num)) / jnp.log(1.0 + jnp.maximum(S, t_den))
    return (x @ W) / jnp.sum(jnp.abs(W))


if __name__ == "__main__":
    key = jax.random.PRNGKey(0)
    k_s, k_w, k_s2 = jax.random.split(key, 3)

    # Shapes implied by the module: self.dim = 32 features; small batch of rows.
    B, D = 8, 32
    S = jax.random.uniform(k_s, (B, D), dtype=jnp.float32) * 5.0
    # Module init: self.W = nn.Parameter(torch.rand(dim)) -> uniform [0, 1)
    W = jax.random.uniform(k_w, (D,), dtype=jnp.float32)
    # T = (thresh_nominator, thresh_denominator)
    T_num, T_den = 1.0, 2.0

    # Default path: f32 stream, exact divide, lane-packed + MXU reduce.
    y = jax.block_until_ready(weight_calculator_forward(S, W, T_num, T_den))
    y_ref = _reference(S, W, T_num, T_den)
    assert y.shape == (B,)
    assert jnp.allclose(y, y_ref, rtol=1e-5, atol=1e-5)

    # Multi-step grid + partial edge block + B not a multiple of PACK.
    B2 = 50
    S2 = jax.random.uniform(k_s2, (B2, D), dtype=jnp.float32) * 5.0
    y2 = jax.block_until_ready(
        weight_calculator_forward(S2, W, T_num, T_den, block_rows=8))
    y2_ref = _reference(S2, W, T_num, T_den)
    assert y2.shape == (B2,)
    assert jnp.allclose(y2, y2_ref, rtol=1e-5, atol=1e-5)

    # Optional bf16 streaming (halves HBM traffic; compute still f32).
    y_bf16 = jax.block_until_ready(
        weight_calculator_forward(S, W, T_num, T_den, stream_dtype=jnp.bfloat16))
    assert jnp.allclose(y_bf16, y_ref, rtol=2e-2, atol=2e-2)

    print("KERNEL_OK")
</pallas_src>

<mosaic_0001>
module attributes {stable_mosaic.version = 11 : i64} {
  func.func @_weight_calc_kernel(%arg0: i32, %arg1: memref<2x128xf32, #tpu.memory_space<vmem>>, %arg2: memref<128x4xf32, #tpu.memory_space<vmem>>, %arg3: memref<2x4xf32, #tpu.memory_space<vmem>>) attributes {dimension_semantics = [#tpu.dimension_semantics<parallel>], iteration_bounds = array<i64: 1>, scalar_prefetch = 0 : i64, scratch_operands = 0 : i64, tpu.core_type = #tpu.core_type<tc>, window_params = [{transform_indices = @transform_0, window_bounds = array<i64: 2, 128>}, {pipeline_mode = #tpu.pipeline_mode<synchronous>, transform_indices = @transform_1, window_bounds = array<i64: 128, 4>}, {transform_indices = @transform_2, window_bounds = array<i64: 2, 4>}]} {
    %c0 = arith.constant 0 : index
    %c0_0 = arith.constant 0 : index
    %0 = vector.load %arg1[%c0, %c0_0] : memref<2x128xf32, #tpu.memory_space<vmem>>, vector<2x128xf32>
    %cst = arith.constant 1.000000e+00 : f32
    %1 = vector.broadcast %cst : f32 to vector<2x128xf32>
    %2 = arith.maximumf %0, %1 : vector<2x128xf32>
    %3 = math.log1p %2 : vector<2x128xf32>
    %cst_1 = arith.constant 2.000000e+00 : f32
    %4 = vector.broadcast %cst_1 : f32 to vector<2x128xf32>
    %5 = arith.maximumf %0, %4 : vector<2x128xf32>
    %6 = math.log1p %5 : vector<2x128xf32>
    %7 = arith.divf %3, %6 : vector<2x128xf32>
    %c0_2 = arith.constant 0 : index
    %c0_3 = arith.constant 0 : index
    %8 = vector.load %arg2[%c0_2, %c0_3] : memref<128x4xf32, #tpu.memory_space<vmem>>, vector<128x4xf32>
    %cst_4 = arith.constant dense<0.000000e+00> : vector<2x4xf32>
    %9 = tpu.matmul %7, %8, %cst_4 {dimension_numbers = #tpu.dot_dimension_numbers<[1], [0], [0], [1], [0, 0, 1, 1], [], []>} : vector<2x128xf32>, vector<128x4xf32>, vector<2x4xf32> -> vector<2x4xf32>
    %c0_5 = arith.constant 0 : index
    %c0_6 = arith.constant 0 : index
    %10 = vector.load %arg3[%c0_5, %c0_6] : memref<2x4xf32, #tpu.memory_space<vmem>>, vector<2x4xf32>
    tpu.vector_store %arg3[%c0_5, %c0_6], %9 {strides = array<i32>} : memref<2x4xf32, #tpu.memory_space<vmem>>, vector<2x4xf32>,
    return
  }
  func.func @transform_0(%arg0: i32) -> (i32, i32) {
    %c0_i32 = arith.constant 0 : i32
    %c0_i32_0 = arith.constant 0 : i32
    return %arg0, %c0_i32 : i32, i32
  }
  func.func @transform_1(%arg0: i32) -> (i32, i32) {
    %c0_i32 = arith.constant 0 : i32
    %c0_i32_0 = arith.constant 0 : i32
    %c0_i32_1 = arith.constant 0 : i32
    return %c0_i32, %c0_i32_0 : i32, i32
  }
  func.func @transform_2(%arg0: i32) -> (i32, i32) {
    %c0_i32 = arith.constant 0 : i32
    %c0_i32_0 = arith.constant 0 : i32
    return %arg0, %c0_i32 : i32, i32
  }
}

</mosaic_0001>

<llo_original>
// kernel: tpu_custom_call.1
$region0: #{tpu_custom_call.1}
  #allocation0 [shape = 'u32[]', space=smem, size = 0x4, offset = 0x4, fixed_abs, tag = 'smem constant byte address 0x4 - core index']
  #allocation1 [shape = 'u32[144,128]{1,0:T(1,128)}', space=vmem, size = 0x12000, scoped, tag = 'internal scratch']
  %s0 = inlined_call_operand.vmem [shape: f32[2,128], index: 0, kind: input, shape index: {}]
  %s1 = inlined_call_operand.vmem [shape: f32[128,4], index: 1, kind: input, shape index: {}]
  %s2 = inlined_call_operand.hbm [shape: f32[2,4], index: 2, kind: output, shape index: {}]
  %s3 = sld [smem:[#allocation0]]
  $region18: #{tpu_custom_call.1} parent=0
    _
  %s5 = ssub.s32 1, %s3
  %s6 = scalar_select 0, %s5, %s3
  $region1: #{tpu_custom_call.1} parent=0
    #allocation2 [shape = 'u8[1024]{0}', space=vmem, size = 0x400, scoped, tag = 'output window, operand 0, single buffered']
    #allocation3 [shape = 's32[1]{0}', space=sflag, size = 0x4, scoped, tag = 'scoped memory for tpu_custom_call.1']
    %7 = vsyncpa [#allocation3], 0
    // Predicated region
    $region2: #{tpu_custom_call.1} parent=1 // pred_check
      _
    $region3: #{tpu_custom_call.1} parent=1 // pred_check_branch
      %9 = sbr.rel (0) target = $region5
    $region4: #{tpu_custom_call.1} parent=1 // pred_region
      _
    $region5: #{tpu_custom_call.1} parent=1 // pred_fallthru
      _
    // Predicated region
    $region6: #{tpu_custom_call.1} parent=1 // pred_check
      _
    $region7: #{tpu_custom_call.1} parent=1 // pred_check_branch
      %11 = sbr.rel (0) target = $region9
    $region8: #{tpu_custom_call.1} parent=1 // pred_region
      _
    $region9: #{tpu_custom_call.1} parent=1 // pred_fallthru
      _
    %v12 = vld [vmem:[%s0] sm:$0x3]
    %v13 = vmax.f32 %v12, 1.0
    %v14 = vadd.f32 %v13, 1.0
    %v15 = vlog2.pop %v14
    %v16 = vmul.f32 %v15, 0.6931472
    %v17 = vmul.f32 -0.5, %v13
    %v18 = vadd.f32 %v17, 1.0
    %v19 = vmul.f32 %v18, %v13
    %v20 = vand.u32 2147483647, %v13
    %vm21 = vcmp.lt.f32.partialorder %v20, 0.0004427343
    %v22 = vsel %vm21, %v19, %v16
    %v23 = vmax.f32 %v12, 2.0
    %v24 = vadd.f32 %v23, 1.0
    %v25 = vlog2.pop %v24
    %v26 = vmul.f32 %v25, 0.6931472
    %v27 = vmul.f32 -0.5, %v23
    %v28 = vadd.f32 %v27, 1.0
    %v29 = vmul.f32 %v28, %v23
    %v30 = vand.u32 2147483647, %v23
    %vm31 = vcmp.lt.f32.partialorder %v30, 0.0004427343
    %v32 = vsel %vm31, %v29, %v26
    %v33 = vrcp.pop %v32
    %v34 = vmul.f32 %v22, %v33
    %v35 = vld [vmem:[%s1] sm:$0xff]
    %v36 = vld [vmem:[%s1 + $0x8] sm:$0xff]
    %v37 = vld [vmem:[%s1 + $0x10] sm:$0xff]
    %v38 = vld [vmem:[%s1 + $0x18] sm:$0xff]
    %v39 = vld [vmem:[%s1 + $0x20] sm:$0xff]
    %v40 = vld [vmem:[%s1 + $0x28] sm:$0xff]
    %v41 = vld [vmem:[%s1 + $0x30] sm:$0xff]
    %v42 = vld [vmem:[%s1 + $0x38] sm:$0xff]
    %v43 = vld [vmem:[%s1 + $0x40] sm:$0xff]
    %v44 = vld [vmem:[%s1 + $0x48] sm:$0xff]
    %v45 = vld [vmem:[%s1 + $0x50] sm:$0xff]
    %v46 = vld [vmem:[%s1 + $0x58] sm:$0xff]
    %v47 = vld [vmem:[%s1 + $0x60] sm:$0xff]
    %v48 = vld [vmem:[%s1 + $0x68] sm:$0xff]
    %v49 = vld [vmem:[%s1 + $0x70] sm:$0xff]
    %v50 = vld [vmem:[%s1 + $0x78] sm:$0xff]
    %51 = vmatprep.subr.mxu0 0.0
    %52 = vmatpush1.msra.mxu0 %v50
    %53 = vmatprep.subr.mxu0 0.0
    %54 = vmatpush1.msra.mxu0 %v49
    %55 = vmatprep.subr.mxu0 0.0
    %56 = vmatpush1.msra.mxu0 %v48
    %57 = vmatprep.subr.mxu0 0.0
    %58 = vmatpush1.msra.mxu0 %v47
    %59 = vmatprep.subr.mxu0 0.0
    %60 = vmatpush1.msra.mxu0 %v46
    %61 = vmatprep.subr.mxu0 0.0
    %62 = vmatpush1.msra.mxu0 %v45
    %63 = vmatprep.subr.mxu0 0.0
    %64 = vmatpush1.msra.mxu0 %v44
    %65 = vmatprep.subr.mxu0 0.0
    %66 = vmatpush1.msra.mxu0 %v43
    %67 = vmatprep.subr.mxu0 0.0
    %68 = vmatpush1.msra.mxu0 %v42
    %69 = vmatprep.subr.mxu0 0.0
    %70 = vmatpush1.msra.mxu0 %v41
    %71 = vmatprep.subr.mxu0 0.0
    %72 = vmatpush1.msra.mxu0 %v40
    %73 = vmatprep.subr.mxu0 0.0
    %74 = vmatpush1.msra.mxu0 %v39
    %75 = vmatprep.subr.mxu0 0.0
    %76 = vmatpush1.msra.mxu0 %v38
    %77 = vmatprep.subr.mxu0 0.0
    %78 = vmatpush1.msra.mxu0 %v37
    %79 = vmatprep.subr.mxu0 0.0
    %80 = vmatpush1.msra.mxu0 %v36
    %81 = vmatprep.subr.mxu0 0.0
    %82 = vmatpush1.msra.mxu0 %v35
    %83 = vmatprep.subr.mxu0 0.0
    %84 = vmatpush2.msra.mxu0 0.0
    %85 = vmatprep.subr.mxu0 0.0
    %86 = vmatpush2.msra.mxu0 0.0
    %87 = vmatprep.subr.mxu0 0.0
    %88 = vmatpush2.msra.mxu0 0.0
    %89 = vmatprep.subr.mxu0 0.0
    %90 = vmatpush2.msra.mxu0 0.0
    %91 = vmatprep.subr.mxu0 0.0
    %92 = vmatpush2.msra.mxu0 0.0
    %93 = vmatprep.subr.mxu0 0.0
    %94 = vmatpush2.msra.mxu0 0.0
    %95 = vmatprep.subr.mxu0 0.0
    %96 = vmatpush2.msra.mxu0 0.0
    %97 = vmatprep.subr.mxu0 0.0
    %98 = vmatpush2.msra.mxu0 0.0
    %99 = vmatprep.subr.mxu0 0.0
    %100 = vmatpush2.msra.mxu0 0.0
    %101 = vmatprep.subr.mxu0 0.0
    %102 = vmatpush2.msra.mxu0 0.0
    %103 = vmatprep.subr.mxu0 0.0
    %104 = vmatpush2.msra.mxu0 0.0
    %105 = vmatprep.subr.mxu0 0.0
    %106 = vmatpush2.msra.mxu0 0.0
    %107 = vmatprep.subr.mxu0 0.0
    %108 = vmatpush2.msra.mxu0 0.0
    %109 = vmatprep.subr.mxu0 0.0
    %110 = vmatpush2.msra.mxu0 0.0
    %111 = vmatprep.subr.mxu0 0.0
    %112 = vmatpush2.msra.mxu0 0.0
    %113 = vmatprep.subr.mxu0 0.0
    %114 = vmatpush2.msra.mxu0 0.0
    %115 = vmatprep.mubr.f32.mxu0 0.0
    %116 = vmatmul.mubr.f32.gmra.mxu0 %v34
    %v117 = vpop.f32.mrf.mxu0
    %v118 = vadd.f32 0.0, %v117
    %v119 = vpop.f32.mrf.mxu0
    %120 = vdwg.mxu0
    %vm121 = vcmask 25600
    %122 = vst.msk [vmem:[#allocation2] sm:$0x3] %vm121, %v118
    // Predicated region
    $region10: #{tpu_custom_call.1} parent=1 // pred_check
      _
    $region11: #{tpu_custom_call.1} parent=1 // pred_check_branch
      %124 = sbr.rel (0) target = $region13
    $region12: #{tpu_custom_call.1} parent=1 // pred_region
      %s126 = ssub.s32 32, 32
      %127 = vsyncadd [#allocation3], %s126
      %s129 = sshll.u32 [#allocation2], 4
      %s130 = int_to_ptr.vmem [resolvable:$true] %s129
      %132 = dma.vmem_to_hbm [thread:$0]  %s130, 32, %s2, [#allocation3]
    $region13: #{tpu_custom_call.1} parent=1 // pred_fallthru
      _
    // Predicated region
    $region14: #{tpu_custom_call.1} parent=1 // pred_check
      _
    $region15: #{tpu_custom_call.1} parent=1 // pred_check_branch
      %134 = sbr.rel (0) target = $region17
    $region16: #{tpu_custom_call.1} parent=1 // pred_region
      %135 = dma.done [#allocation3], 32
    $region17: #{tpu_custom_call.1} parent=1 // pred_fallthru
      _
    %136 = vsyncpa [#allocation3], 1

</llo_original>
